<compile_context>
chip_gen: v6e
topology: v6e:2x2x1
jax: 0.10.0
libtpu: 0.0.40
codegen_flags: <defaults>
</compile_context>

<pallas_src>
import jax
import jax.numpy as jnp
from jax.experimental import pallas as pl
from jax.experimental.pallas import tpu as pltpu

H1 = 128        # first hidden width (lane-aligned)
H2 = 64         # second hidden width (kept at its native 64; no zero padding)
MAX_TILE_B = 16384


def discriminator_kernel(x_ref, w1_ref, b1_ref, w2_ref, b2_ref, w3_ref, b3_ref, o_ref):
    cdt = w1_ref.dtype
    # Layer 1: (TILE_B, D) @ (D, 128) on the MXU, f32 accumulate; bias+ReLU in f32 (VPU).
    h1 = jnp.dot(x_ref[...].astype(cdt), w1_ref[...], preferred_element_type=jnp.float32)
    h1 = jnp.maximum(h1 + b1_ref[...], 0.0)
    # Layer 2: (TILE_B, 128) @ (128, 64) on the MXU.
    h2 = jnp.dot(h1.astype(cdt), w2_ref[...], preferred_element_type=jnp.float32)
    h2 = jnp.maximum(h2 + b2_ref[...], 0.0)
    # Layer 3 (out_features == 1): N=1 matmul on the MXU (plenty of slack in this
    # mem-bound kernel), then a small (TILE_B,1)->(1,TILE_B) relayout so the store
    # is a lane-dense row.
    col = jnp.dot(h2.astype(cdt), w3_ref[...], preferred_element_type=jnp.float32)  # (TILE_B, 1)
    logits = col.T + b3_ref[...]                                                     # (1, TILE_B)
    o_ref[...] = jax.nn.sigmoid(logits)


def _round_up(n, m):
    return ((n + m - 1) // m) * m


def _vmem_capacity_bytes():
    """Per-core VMEM, generation-aware (v4/v5e/v6e: 128 MiB, v7x: 64 MiB)."""
    kind = ""
    try:
        kind = jax.devices()[0].device_kind.lower()
    except Exception:
        pass
    if "v2" in kind or "v3" in kind:
        cap = 16 << 20
    elif any(t in kind for t in ("v4", "v5", "v6")):
        cap = 128 << 20
    else:
        cap = 64 << 20          # v7x and unknown: stay conservative
    try:
        info = int(pltpu.get_tpu_info().vmem_capacity_bytes)
        if info > 0:
            return min(info, cap)
    except Exception:
        pass
    return cap


def _per_row_vmem_bytes(input_dim, x_itemsize, w_itemsize):
    """VMEM bytes per batch row of one tile."""
    return (2 * input_dim * x_itemsize      # x tile, double-buffered
            + 2 * 4                          # (1, tile_b) f32 output row, double-buffered
            + (H1 + H2) * 4                  # h1 / h2 f32 intermediates
            + (H1 + H2) * w_itemsize         # compute-dtype casts fed to the MXU
            + (H1 + H2) * 4)                 # slack: ReLU temps / relayouts


def _choose_tile_b(batch, per_row, param_bytes, vmem_bytes):
    """Largest safe batch tile; multi-tile tiles are multiples of 128 (lane-dense out)."""
    b8 = _round_up(max(batch, 1), 8)
    budget = int(vmem_bytes * 0.75) - 2 * param_bytes   # ~25% headroom for Mosaic scratch
    tile = max(budget // per_row, 8)
    tile = min(tile, MAX_TILE_B)
    if b8 >= 256:
        # Guarantee >=2 grid steps so ("parallel",) can shard the batch across both
        # TensorCores on v7x (an extra grid step elsewhere costs ~0.35us: negligible).
        tile = min(tile, _round_up((b8 + 1) // 2, 128))
    if tile >= b8:
        return b8, 1                      # single tile covers the whole (8-rounded) batch
    tile = max((tile // 128) * 128, 128)  # lane-dense output blocks need tile_b % 128 == 0
    return tile, -(-b8 // tile)


def discriminator_forward(x, params, *, compute_dtype=jnp.bfloat16):
    """x: (B, input_dim). params: weights stored (in, out), biases (1, out).

    compute_dtype=bf16 (default) halves the dominant HBM stream when x is already
    stored in bf16 (pass it that way; otherwise the kernel casts per-tile).  Matmuls
    always accumulate in f32; bias/ReLU/sigmoid run in f32.  Expected deviation from
    the f32 XLA reference: ~1e-3 for compute_dtype=f32 (MXU default precision),
    ~1e-2 for bf16."""
    B, input_dim = x.shape
    w_itemsize = jnp.dtype(compute_dtype).itemsize
    x_itemsize = jnp.dtype(x.dtype).itemsize

    # ---- parameters: cast once; tiny, VMEM-resident for the whole grid ----
    w1 = params["w1"].astype(compute_dtype)                 # (D, 128)
    b1 = params["b1"].astype(jnp.float32).reshape(1, H1)    # (1, 128)
    w2 = params["w2"].astype(compute_dtype)                 # (128, 64)
    b2 = params["b2"].astype(jnp.float32).reshape(1, H2)    # (1, 64)
    w3 = params["w3"].astype(compute_dtype)                 # (64, 1)
    b3 = params["b3"].astype(jnp.float32).reshape(1, 1)     # (1, 1)
    param_arrays = (w1, b1, w2, b2, w3, b3)
    param_bytes = sum(int(a.size) * jnp.dtype(a.dtype).itemsize for a in param_arrays)

    # ---- batch tiling (no padding copy of x; ragged last tile handled by Pallas) ----
    vmem_bytes = _vmem_capacity_bytes()
    per_row = _per_row_vmem_bytes(input_dim, x_itemsize, w_itemsize)
    tile_b, num_tiles = _choose_tile_b(B, per_row, param_bytes, vmem_bytes)
    b_proc = num_tiles * tile_b

    cost = pl.CostEstimate(
        flops=2 * b_proc * (input_dim * H1 + H1 * H2 + H2),
        transcendentals=2 * b_proc,     # sigmoid ~= exp + reciprocal per row
        bytes_accessed=b_proc * input_dim * x_itemsize + b_proc * 4 + param_bytes,
    )
    vmem_limit = int(min(vmem_bytes,
                         max(32 << 20, 2 * param_bytes + tile_b * per_row + (8 << 20))))

    def const_spec(shape):
        return pl.BlockSpec(shape, lambda i: (0, 0))        # full-array, VMEM-resident

    out_row = pl.pallas_call(
        discriminator_kernel,
        out_shape=jax.ShapeDtypeStruct((1, b_proc), jnp.float32),
        grid=(num_tiles,),
        in_specs=[
            pl.BlockSpec((tile_b, input_dim), lambda i: (i, 0)),   # x streamed over batch
            const_spec(w1.shape), const_spec(b1.shape),
            const_spec(w2.shape), const_spec(b2.shape),
            const_spec(w3.shape), const_spec(b3.shape),
        ],
        out_specs=pl.BlockSpec((1, tile_b), lambda i: (0, i)),     # lane-dense output row
        compiler_params=pltpu.CompilerParams(
            dimension_semantics=("parallel",),
            vmem_limit_bytes=vmem_limit,
        ),
        cost_estimate=cost,
    )(x, *param_arrays)

    # Column j of the output row is batch row j; drop ragged-tail columns (garbage rows).
    return out_row[0, :B][:, None].astype(jnp.float32)


def init_params(key, input_dim):
    """Deterministic synthetic init (matches nn.Linear shapes, stored (in, out))."""
    ks = jax.random.split(key, 6)

    def u(k, shape, fan_in):
        bound = 1.0 / jnp.sqrt(fan_in)
        return jax.random.uniform(k, shape, jnp.float32, -bound, bound)

    return {
        "w1": u(ks[0], (input_dim, H1), input_dim),
        "b1": u(ks[1], (1, H1), input_dim),
        "w2": u(ks[2], (H1, H2), H1),
        "b2": u(ks[3], (1, H2), H1),
        "w3": u(ks[4], (H2, 1), H2),
        "b3": u(ks[5], (1, 1), H2),
    }


def reference_forward(x, p):
    h1 = jnp.maximum(x @ p["w1"] + p["b1"], 0.0)
    h2 = jnp.maximum(h1 @ p["w2"] + p["b2"], 0.0)
    return jax.nn.sigmoid(h2 @ p["w3"] + p["b3"])


if __name__ == "__main__":
    key = jax.random.PRNGKey(0)
    k_x, k_x2, k_p = jax.random.split(key, 3)

    input_dim = 32
    params = init_params(k_p, input_dim)

    # 1) default bf16 streaming path, small batch, single tile.
    x = jax.random.normal(k_x, (8, input_dim), jnp.float32)
    out = jax.block_until_ready(discriminator_forward(x.astype(jnp.bfloat16), params))
    ref = reference_forward(x, params)
    assert out.shape == (8, 1)
    assert jnp.allclose(out, ref, atol=3e-2), float(jnp.max(jnp.abs(out - ref)))

    # 2) f32 path: tight(er) tolerance vs the XLA reference (both use MXU default precision).
    out32 = jax.block_until_ready(discriminator_forward(x, params, compute_dtype=jnp.float32))
    assert jnp.allclose(out32, ref, atol=5e-3), float(jnp.max(jnp.abs(out32 - ref)))

    # 3) ragged batch exercising the multi-tile path (>=2 grid steps, OOB tail rows dropped).
    xb = jax.random.normal(k_x2, (300, input_dim), jnp.float32)
    outb = jax.block_until_ready(discriminator_forward(xb.astype(jnp.bfloat16), params))
    refb = reference_forward(xb, params)
    assert outb.shape == (300, 1)
    assert jnp.allclose(outb, refb, atol=3e-2), float(jnp.max(jnp.abs(outb - refb)))

    print("KERNEL_OK")
</pallas_src>

<mosaic_0001>
module attributes {stable_mosaic.version = 11 : i64} {
  func.func @discriminator_kernel(%arg0: i32, %arg1: memref<8x32xbf16, #tpu.memory_space<vmem>>, %arg2: memref<32x128xbf16, #tpu.memory_space<vmem>>, %arg3: memref<1x128xf32, #tpu.memory_space<vmem>>, %arg4: memref<128x64xbf16, #tpu.memory_space<vmem>>, %arg5: memref<1x64xf32, #tpu.memory_space<vmem>>, %arg6: memref<64x1xbf16, #tpu.memory_space<vmem>>, %arg7: memref<1x1xf32, #tpu.memory_space<vmem>>, %arg8: memref<1x8xf32, #tpu.memory_space<vmem>>) attributes {dimension_semantics = [#tpu.dimension_semantics<parallel>], iteration_bounds = array<i64: 1>, scalar_prefetch = 0 : i64, scratch_operands = 0 : i64, tpu.core_type = #tpu.core_type<tc>, window_params = [{transform_indices = @transform_0, window_bounds = array<i64: 8, 32>}, {pipeline_mode = #tpu.pipeline_mode<synchronous>, transform_indices = @transform_1, window_bounds = array<i64: 32, 128>}, {pipeline_mode = #tpu.pipeline_mode<synchronous>, transform_indices = @transform_2, window_bounds = array<i64: 1, 128>}, {pipeline_mode = #tpu.pipeline_mode<synchronous>, transform_indices = @transform_3, window_bounds = array<i64: 128, 64>}, {pipeline_mode = #tpu.pipeline_mode<synchronous>, transform_indices = @transform_4, window_bounds = array<i64: 1, 64>}, {pipeline_mode = #tpu.pipeline_mode<synchronous>, transform_indices = @transform_5, window_bounds = array<i64: 64, 1>}, {pipeline_mode = #tpu.pipeline_mode<synchronous>, transform_indices = @transform_6, window_bounds = array<i64: 1, 1>}, {transform_indices = @transform_7, window_bounds = array<i64: 1, 8>}]} {
    %c0 = arith.constant 0 : index
    %c0_0 = arith.constant 0 : index
    %0 = vector.load %arg1[%c0, %c0_0] : memref<8x32xbf16, #tpu.memory_space<vmem>>, vector<8x32xbf16>
    %c0_1 = arith.constant 0 : index
    %c0_2 = arith.constant 0 : index
    %1 = vector.load %arg2[%c0_1, %c0_2] : memref<32x128xbf16, #tpu.memory_space<vmem>>, vector<32x128xbf16>
    %cst = arith.constant dense<0.000000e+00> : vector<8x128xf32>
    %2 = tpu.matmul %0, %1, %cst {dimension_numbers = #tpu.dot_dimension_numbers<[1], [0], [0], [1], [0, 0, 1, 1], [], []>} : vector<8x32xbf16>, vector<32x128xbf16>, vector<8x128xf32> -> vector<8x128xf32>
    %c0_3 = arith.constant 0 : index
    %c0_4 = arith.constant 0 : index
    %3 = vector.load %arg3[%c0_3, %c0_4] : memref<1x128xf32, #tpu.memory_space<vmem>>, vector<1x128xf32>
    %4 = vector.broadcast %3 : vector<1x128xf32> to vector<8x128xf32>
    %5 = arith.addf %2, %4 : vector<8x128xf32>
    %cst_5 = arith.constant 0.000000e+00 : f32
    %6 = vector.broadcast %cst_5 : f32 to vector<8x128xf32>
    %7 = arith.maximumf %5, %6 : vector<8x128xf32>
    %8 = arith.truncf %7 : vector<8x128xf32> to vector<8x128xbf16>
    %c0_6 = arith.constant 0 : index
    %c0_7 = arith.constant 0 : index
    %9 = vector.load %arg4[%c0_6, %c0_7] : memref<128x64xbf16, #tpu.memory_space<vmem>>, vector<128x64xbf16>
    %cst_8 = arith.constant dense<0.000000e+00> : vector<8x64xf32>
    %10 = tpu.matmul %8, %9, %cst_8 {dimension_numbers = #tpu.dot_dimension_numbers<[1], [0], [0], [1], [0, 0, 1, 1], [], []>} : vector<8x128xbf16>, vector<128x64xbf16>, vector<8x64xf32> -> vector<8x64xf32>
    %c0_9 = arith.constant 0 : index
    %c0_10 = arith.constant 0 : index
    %11 = vector.load %arg5[%c0_9, %c0_10] : memref<1x64xf32, #tpu.memory_space<vmem>>, vector<1x64xf32>
    %12 = vector.broadcast %11 : vector<1x64xf32> to vector<8x64xf32>
    %13 = arith.addf %10, %12 : vector<8x64xf32>
    %cst_11 = arith.constant 0.000000e+00 : f32
    %14 = vector.broadcast %cst_11 : f32 to vector<8x64xf32>
    %15 = arith.maximumf %13, %14 : vector<8x64xf32>
    %16 = arith.truncf %15 : vector<8x64xf32> to vector<8x64xbf16>
    %c0_12 = arith.constant 0 : index
    %c0_13 = arith.constant 0 : index
    %17 = vector.load %arg6[%c0_12, %c0_13] : memref<64x1xbf16, #tpu.memory_space<vmem>>, vector<64x1xbf16>
    %cst_14 = arith.constant dense<0.000000e+00> : vector<8x1xf32>
    %18 = tpu.matmul %16, %17, %cst_14 {dimension_numbers = #tpu.dot_dimension_numbers<[1], [0], [0], [1], [0, 0, 1, 1], [], []>} : vector<8x64xbf16>, vector<64x1xbf16>, vector<8x1xf32> -> vector<8x1xf32>
    %19 = tpu.transpose %18, [1, 0] : vector<8x1xf32> -> vector<1x8xf32>
    %c0_15 = arith.constant 0 : index
    %c0_16 = arith.constant 0 : index
    %20 = vector.load %arg7[%c0_15, %c0_16] : memref<1x1xf32, #tpu.memory_space<vmem>>, vector<1x1xf32>
    %21 = vector.broadcast %20 : vector<1x1xf32> to vector<1x8xf32>
    %22 = arith.addf %19, %21 : vector<1x8xf32>
    %23 = arith.negf %22 : vector<1x8xf32>
    %24 = math.exp %23 : vector<1x8xf32>
    %cst_17 = arith.constant 1.000000e+00 : f32
    %25 = vector.broadcast %cst_17 : f32 to vector<1x8xf32>
    %26 = arith.addf %25, %24 : vector<1x8xf32>
    %27 = arith.divf %25, %26 : vector<1x8xf32>
    %c0_18 = arith.constant 0 : index
    %c0_19 = arith.constant 0 : index
    %28 = vector.load %arg8[%c0_18, %c0_19] : memref<1x8xf32, #tpu.memory_space<vmem>>, vector<1x8xf32>
    tpu.vector_store %arg8[%c0_18, %c0_19], %27 {strides = array<i32>} : memref<1x8xf32, #tpu.memory_space<vmem>>, vector<1x8xf32>,
    return
  }
  func.func @transform_0(%arg0: i32) -> (i32, i32) {
    %c0_i32 = arith.constant 0 : i32
    %c0_i32_0 = arith.constant 0 : i32
    return %arg0, %c0_i32 : i32, i32
  }
  func.func @transform_1(%arg0: i32) -> (i32, i32) {
    %c0_i32 = arith.constant 0 : i32
    %c0_i32_0 = arith.constant 0 : i32
    %c0_i32_1 = arith.constant 0 : i32
    return %c0_i32, %c0_i32_0 : i32, i32
  }
  func.func @transform_2(%arg0: i32) -> (i32, i32) {
    %c0_i32 = arith.constant 0 : i32
    %c0_i32_0 = arith.constant 0 : i32
    %c0_i32_1 = arith.constant 0 : i32
    return %c0_i32, %c0_i32_0 : i32, i32
  }
  func.func @transform_3(%arg0: i32) -> (i32, i32) {
    %c0_i32 = arith.constant 0 : i32
    %c0_i32_0 = arith.constant 0 : i32
    %c0_i32_1 = arith.constant 0 : i32
    return %c0_i32, %c0_i32_0 : i32, i32
  }
  func.func @transform_4(%arg0: i32) -> (i32, i32) {
    %c0_i32 = arith.constant 0 : i32
    %c0_i32_0 = arith.constant 0 : i32
    %c0_i32_1 = arith.constant 0 : i32
    return %c0_i32, %c0_i32_0 : i32, i32
  }
  func.func @transform_5(%arg0: i32) -> (i32, i32) {
    %c0_i32 = arith.constant 0 : i32
    %c0_i32_0 = arith.constant 0 : i32
    %c0_i32_1 = arith.constant 0 : i32
    return %c0_i32, %c0_i32_0 : i32, i32
  }
  func.func @transform_6(%arg0: i32) -> (i32, i32) {
    %c0_i32 = arith.constant 0 : i32
    %c0_i32_0 = arith.constant 0 : i32
    %c0_i32_1 = arith.constant 0 : i32
    return %c0_i32, %c0_i32_0 : i32, i32
  }
  func.func @transform_7(%arg0: i32) -> (i32, i32) {
    %c0_i32 = arith.constant 0 : i32
    %c0_i32_0 = arith.constant 0 : i32
    return %c0_i32, %arg0 : i32, i32
  }
}

</mosaic_0001>

<llo_original>
// kernel: tpu_custom_call.1
$region0: #{tpu_custom_call.1}
  #allocation0 [shape = 'u32[]', space=smem, size = 0x4, offset = 0x4, fixed_abs, tag = 'smem constant byte address 0x4 - core index']
  #allocation1 [shape = 'u32[144,128]{1,0:T(1,128)}', space=vmem, size = 0x12000, scoped, tag = 'internal scratch']
  #allocation2 [shape = 'f32[1,1]{1,0:T(1,128)S(1)}', space=vmem, size = 0x200, scoped, tag = 'scoped memory for tpu_custom_call.1']
  %s0 = inlined_call_operand.vmem [shape: bf16[8,32], index: 0, kind: input, shape index: {}]
  %s1 = inlined_call_operand.vmem [shape: bf16[32,128], index: 1, kind: input, shape index: {}]
  %s2 = inlined_call_operand.vmem [shape: f32[1,128], index: 2, kind: input, shape index: {}]
  %s3 = inlined_call_operand.vmem [shape: bf16[128,64], index: 3, kind: input, shape index: {}]
  %s4 = inlined_call_operand.vmem [shape: f32[1,64], index: 4, kind: input, shape index: {}]
  %s5 = inlined_call_operand.vmem [shape: bf16[64,1], index: 5, kind: input, shape index: {}]
  %s6 = inlined_call_operand.<no memory space> [shape: f32[1,1], index: 6, kind: input, shape index: {}]
  %s7 = inlined_call_operand.hbm [shape: f32[1,8], index: 7, kind: output, shape index: {}]
  %s8 = sld [smem:[#allocation0]]
  $region38: #{tpu_custom_call.1} parent=0
    _
  %s10 = ssub.s32 1, %s8
  %s11 = scalar_select 0, %s10, %s8
  %v12 = vstv %s6
  %13 = vst [vmem:[#allocation2] sm:$0x1] %v12
  $region1: #{tpu_custom_call.1} parent=0
    #allocation3 [shape = 'u8[512]{0}', space=vmem, size = 0x400, scoped, tag = 'output window, operand 0, single buffered']
    #allocation4 [shape = 's32[1]{0}', space=sflag, size = 0x4, scoped, tag = 'scoped memory for tpu_custom_call.1']
    %14 = vsyncpa [#allocation4], 0
    // Predicated region
    $region2: #{tpu_custom_call.1} parent=1 // pred_check
      _
    $region3: #{tpu_custom_call.1} parent=1 // pred_check_branch
      %16 = sbr.rel (0) target = $region5
    $region4: #{tpu_custom_call.1} parent=1 // pred_region
      _
    $region5: #{tpu_custom_call.1} parent=1 // pred_fallthru
      _
    // Predicated region
    $region6: #{tpu_custom_call.1} parent=1 // pred_check
      _
    $region7: #{tpu_custom_call.1} parent=1 // pred_check_branch
      %18 = sbr.rel (0) target = $region9
    $region8: #{tpu_custom_call.1} parent=1 // pred_region
      _
    $region9: #{tpu_custom_call.1} parent=1 // pred_fallthru
      _
    // Predicated region
    $region10: #{tpu_custom_call.1} parent=1 // pred_check
      _
    $region11: #{tpu_custom_call.1} parent=1 // pred_check_branch
      %20 = sbr.rel (0) target = $region13
    $region12: #{tpu_custom_call.1} parent=1 // pred_region
      _
    $region13: #{tpu_custom_call.1} parent=1 // pred_fallthru
      _
    // Predicated region
    $region14: #{tpu_custom_call.1} parent=1 // pred_check
      _
    $region15: #{tpu_custom_call.1} parent=1 // pred_check_branch
      %22 = sbr.rel (0) target = $region17
    $region16: #{tpu_custom_call.1} parent=1 // pred_region
      _
    $region17: #{tpu_custom_call.1} parent=1 // pred_fallthru
      _
    // Predicated region
    $region18: #{tpu_custom_call.1} parent=1 // pred_check
      _
    $region19: #{tpu_custom_call.1} parent=1 // pred_check_branch
      %24 = sbr.rel (0) target = $region21
    $region20: #{tpu_custom_call.1} parent=1 // pred_region
      _
    $region21: #{tpu_custom_call.1} parent=1 // pred_fallthru
      _
    // Predicated region
    $region22: #{tpu_custom_call.1} parent=1 // pred_check
      _
    $region23: #{tpu_custom_call.1} parent=1 // pred_check_branch
      %26 = sbr.rel (0) target = $region25
    $region24: #{tpu_custom_call.1} parent=1 // pred_region
      _
    $region25: #{tpu_custom_call.1} parent=1 // pred_fallthru
      _
    // Predicated region
    $region26: #{tpu_custom_call.1} parent=1 // pred_check
      _
    $region27: #{tpu_custom_call.1} parent=1 // pred_check_branch
      %28 = sbr.rel (0) target = $region29
    $region28: #{tpu_custom_call.1} parent=1 // pred_region
      _
    $region29: #{tpu_custom_call.1} parent=1 // pred_fallthru
      _
    %v30 = vld [vmem:[%s0] sm:$0xf]
    %v31 = vld [vmem:[%s1] sm:$0xf]
    %v32 = vld [vmem:[%s1 + $0x4] sm:$0xf]
    %v33 = vld [vmem:[%s1 + $0x8] sm:$0xf]
    %v34 = vld [vmem:[%s1 + $0xc] sm:$0xf]
    %v35 = vld [vmem:[%s2] sm:$0x1]
    %v37 = vlaneseq
    %v38 = vshrl.u32 %v37, 7
    %v39 = vsub.s32 0, %v38
    %v40 = vrot.slane %v35, %v39
    %v46 = vunpack.c.l.b16 %v31
    %v47 = vunpack.c.l.b16 %v32
    %v48 = vunpack.c.l.b16 %v33
    %v49 = vunpack.c.l.b16 %v34
    %v50 = vpack.c.b16 %v47, %v46
    %v51 = vpack.c.b16 %v49, %v48
    %vm54 = vcmask 261120
    %v56 = vsel %vm54, %v30, 0
    %58 = vmatprep.subr.bf16.mxu0 0
    %59 = vmatpush1.bf16.msra.mxu0 0
    %60 = vmatprep.subr.bf16.mxu0 0
    %61 = vmatpush1.bf16.msra.mxu0 0
    %62 = vmatprep.subr.bf16.mxu0 0
    %63 = vmatpush1.bf16.msra.mxu0 0
    %64 = vmatprep.subr.bf16.mxu0 0
    %65 = vmatpush1.bf16.msra.mxu0 0
    %66 = vmatprep.subr.bf16.mxu0 0
    %67 = vmatpush1.bf16.msra.mxu0 0
    %68 = vmatprep.subr.bf16.mxu0 0
    %69 = vmatpush1.bf16.msra.mxu0 0
    %70 = vmatprep.subr.bf16.mxu0 0
    %71 = vmatpush1.bf16.msra.mxu0 %v51
    %72 = vmatprep.subr.bf16.mxu0 0
    %73 = vmatpush1.bf16.msra.mxu0 %v50
    %74 = vmatprep.subr.bf16.mxu0 0
    %75 = vmatpush2.bf16.msra.mxu0 0
    %76 = vmatprep.subr.bf16.mxu0 0
    %77 = vmatpush2.bf16.msra.mxu0 0
    %78 = vmatprep.subr.bf16.mxu0 0
    %79 = vmatpush2.bf16.msra.mxu0 0
    %80 = vmatprep.subr.bf16.mxu0 0
    %81 = vmatpush2.bf16.msra.mxu0 0
    %82 = vmatprep.subr.bf16.mxu0 0
    %83 = vmatpush2.bf16.msra.mxu0 0
    %84 = vmatprep.subr.bf16.mxu0 0
    %85 = vmatpush2.bf16.msra.mxu0 0
    %86 = vmatprep.subr.bf16.mxu0 0
    %87 = vmatpush2.bf16.msra.mxu0 0
    %88 = vmatprep.subr.bf16.mxu0 0
    %89 = vmatpush2.bf16.msra.mxu0 0
    %90 = vmatprep.mubr.bf16.mxu0 0
    %91 = vmatmul.mubr.bf16.gmra.mxu0 %v56
    %v92 = vpop.f32.mrf.mxu0
    %v93 = vadd.f32 %v40, %v92
    %v94 = vpop.f32.mrf.mxu0
    %v95 = vpop.f32.mrf.mxu0
    %v96 = vpop.f32.mrf.mxu0
    %97 = vdwg.mxu0
    %v98 = vmax.f32 %v93, 0.0
    %v99 = vpack.c.bf16 %v98, %v98
    %v100 = vld [vmem:[%s3] sm:$0xf]
    %v101 = vld [vmem:[%s3 + $0x4] sm:$0xf]
    %v102 = vld [vmem:[%s3 + $0x8] sm:$0xf]
    %v103 = vld [vmem:[%s3 + $0xc] sm:$0xf]
    %v104 = vld [vmem:[%s3 + $0x10] sm:$0xf]
    %v105 = vld [vmem:[%s3 + $0x14] sm:$0xf]
    %v106 = vld [vmem:[%s3 + $0x18] sm:$0xf]
    %v107 = vld [vmem:[%s3 + $0x1c] sm:$0xf]
    %v108 = vld [vmem:[%s3 + $0x20] sm:$0xf]
    %v109 = vld [vmem:[%s3 + $0x24] sm:$0xf]
    %v110 = vld [vmem:[%s3 + $0x28] sm:$0xf]
    %v111 = vld [vmem:[%s3 + $0x2c] sm:$0xf]
    %v112 = vld [vmem:[%s3 + $0x30] sm:$0xf]
    %v113 = vld [vmem:[%s3 + $0x34] sm:$0xf]
    %v114 = vld [vmem:[%s3 + $0x38] sm:$0xf]
    %v115 = vld [vmem:[%s3 + $0x3c] sm:$0xf]
    %v116 = vld [vmem:[%s4] sm:$0x1]
    %v118 = vlaneseq
    %v119 = vshrl.u32 %v118, 7
    %v120 = vsub.s32 0, %v119
    %v121 = vrot.slane %v116, %v120
    %v139 = vunpack.c.l.b16 %v100
    %v140 = vunpack.c.l.b16 %v101
    %v141 = vunpack.c.l.b16 %v102
    %v142 = vunpack.c.l.b16 %v103
    %v143 = vunpack.c.l.b16 %v104
    %v144 = vunpack.c.l.b16 %v105
    %v145 = vunpack.c.l.b16 %v106
    %v146 = vunpack.c.l.b16 %v107
    %v147 = vunpack.c.l.b16 %v108
    %v148 = vunpack.c.l.b16 %v109
    %v149 = vunpack.c.l.b16 %v110
    %v150 = vunpack.c.l.b16 %v111
    %v151 = vunpack.c.l.b16 %v112
    %v152 = vunpack.c.l.b16 %v113
    %v153 = vunpack.c.l.b16 %v114
    %v154 = vunpack.c.l.b16 %v115
    %v155 = vpack.c.b16 %v140, %v139
    %v156 = vpack.c.b16 %v142, %v141
    %v157 = vpack.c.b16 %v144, %v143
    %v158 = vpack.c.b16 %v146, %v145
    %v159 = vpack.c.b16 %v148, %v147
    %v160 = vpack.c.b16 %v150, %v149
    %v161 = vpack.c.b16 %v152, %v151
    %v162 = vpack.c.b16 %v154, %v153
    %171 = vmatprep.subr.bf16.mxu0 0
    %172 = vmatpush1.bf16.msra.mxu0 %v162
    %173 = vmatprep.subr.bf16.mxu0 0
    %174 = vmatpush1.bf16.msra.mxu0 %v161
    %175 = vmatprep.subr.bf16.mxu0 0
    %176 = vmatpush1.bf16.msra.mxu0 %v160
    %177 = vmatprep.subr.bf16.mxu0 0
    %178 = vmatpush1.bf16.msra.mxu0 %v159
    %179 = vmatprep.subr.bf16.mxu0 0
    %180 = vmatpush1.bf16.msra.mxu0 %v158
    %181 = vmatprep.subr.bf16.mxu0 0
    %182 = vmatpush1.bf16.msra.mxu0 %v157
    %183 = vmatprep.subr.bf16.mxu0 0
    %184 = vmatpush1.bf16.msra.mxu0 %v156
    %185 = vmatprep.subr.bf16.mxu0 0
    %186 = vmatpush1.bf16.msra.mxu0 %v155
    %187 = vmatprep.subr.bf16.mxu0 0
    %188 = vmatpush2.bf16.msra.mxu0 0
    %189 = vmatprep.subr.bf16.mxu0 0
    %190 = vmatpush2.bf16.msra.mxu0 0
    %191 = vmatprep.subr.bf16.mxu0 0
    %192 = vmatpush2.bf16.msra.mxu0 0
    %193 = vmatprep.subr.bf16.mxu0 0
    %194 = vmatpush2.bf16.msra.mxu0 0
    %195 = vmatprep.subr.bf16.mxu0 0
    %196 = vmatpush2.bf16.msra.mxu0 0
    %197 = vmatprep.subr.bf16.mxu0 0
    %198 = vmatpush2.bf16.msra.mxu0 0
    %199 = vmatprep.subr.bf16.mxu0 0
    %200 = vmatpush2.bf16.msra.mxu0 0
    %201 = vmatprep.subr.bf16.mxu0 0
    %202 = vmatpush2.bf16.msra.mxu0 0
    %203 = vmatprep.mubr.bf16.mxu0 0
    %204 = vmatmul.mubr.bf16.gmra.mxu0 %v99
    %v205 = vpop.f32.mrf.mxu0
    %v206 = vadd.f32 %v121, %v205
    %v207 = vpop.f32.mrf.mxu0
    %v208 = vpop.f32.mrf.mxu0
    %v209 = vpop.f32.mrf.mxu0
    %210 = vdwg.mxu0
    %v211 = vmax.f32 %v206, 0.0
    %v212 = vpack.c.bf16 %v211, %v211
    %v213 = vld [vmem:[%s5] sm:$0xf]
    %v214 = vld [vmem:[%s5 + $0x4] sm:$0xf]
    %v215 = vld [vmem:[%s5 + $0x8] sm:$0xf]
    %v216 = vld [vmem:[%s5 + $0xc] sm:$0xf]
    %v217 = vld [vmem:[%s5 + $0x10] sm:$0xf]
    %v218 = vld [vmem:[%s5 + $0x14] sm:$0xf]
    %v219 = vld [vmem:[%s5 + $0x18] sm:$0xf]
    %v220 = vld [vmem:[%s5 + $0x1c] sm:$0xf]
    %v229 = vunpack.c.l.b16 %v213
    %v230 = vunpack.c.l.b16 %v214
    %v231 = vunpack.c.l.b16 %v215
    %v232 = vunpack.c.l.b16 %v216
    %v233 = vunpack.c.l.b16 %v217
    %v234 = vunpack.c.l.b16 %v218
    %v235 = vunpack.c.l.b16 %v219
    %v236 = vunpack.c.l.b16 %v220
    %v237 = vpack.c.b16 %v230, %v229
    %v238 = vpack.c.b16 %v232, %v231
    %v239 = vpack.c.b16 %v234, %v233
    %v240 = vpack.c.b16 %v236, %v235
    %vm245 = vcmask 523264
    %v247 = vsel %vm245, %v212, 0
    %249 = vmatprep.subr.bf16.mxu0 0
    %250 = vmatpush1.bf16.msra.mxu0 0
    %251 = vmatprep.subr.bf16.mxu0 0
    %252 = vmatpush1.bf16.msra.mxu0 0
    %253 = vmatprep.subr.bf16.mxu0 0
    %254 = vmatpush1.bf16.msra.mxu0 0
    %255 = vmatprep.subr.bf16.mxu0 0
    %256 = vmatpush1.bf16.msra.mxu0 0
    %257 = vmatprep.subr.bf16.mxu0 0
    %258 = vmatpush1.bf16.msra.mxu0 %v240
    %259 = vmatprep.subr.bf16.mxu0 0
    %260 = vmatpush1.bf16.msra.mxu0 %v239
    %261 = vmatprep.subr.bf16.mxu0 0
    %262 = vmatpush1.bf16.msra.mxu0 %v238
    %263 = vmatprep.subr.bf16.mxu0 0
    %264 = vmatpush1.bf16.msra.mxu0 %v237
    %265 = vmatprep.subr.bf16.mxu0 0
    %266 = vmatpush2.bf16.msra.mxu0 0
    %267 = vmatprep.subr.bf16.mxu0 0
    %268 = vmatpush2.bf16.msra.mxu0 0
    %269 = vmatprep.subr.bf16.mxu0 0
    %270 = vmatpush2.bf16.msra.mxu0 0
    %271 = vmatprep.subr.bf16.mxu0 0
    %272 = vmatpush2.bf16.msra.mxu0 0
    %273 = vmatprep.subr.bf16.mxu0 0
    %274 = vmatpush2.bf16.msra.mxu0 0
    %275 = vmatprep.subr.bf16.mxu0 0
    %276 = vmatpush2.bf16.msra.mxu0 0
    %277 = vmatprep.subr.bf16.mxu0 0
    %278 = vmatpush2.bf16.msra.mxu0 0
    %279 = vmatprep.subr.bf16.mxu0 0
    %280 = vmatpush2.bf16.msra.mxu0 0
    %281 = vmatprep.mubr.bf16.mxu0 0
    %282 = vmatmul.mubr.bf16.gmra.mxu0 %v247
    %v283 = vpop.f32.mrf.mxu0
    %v284 = vadd.f32 0.0, %v283
    %v285 = vpop.f32.mrf.mxu0
    %v286 = vpop.f32.mrf.mxu0
    %v287 = vpop.f32.mrf.mxu0
    %288 = vdwg.mxu0
    %289 = vxpose.xlu0.b32.start [1/16] %v284, 128
    %290 = vxpose.xlu0.b32.cont [2/16] 0.0, 128
    %291 = vxpose.xlu0.b32.cont [3/16] 0.0, 128
    %292 = vxpose.xlu0.b32.cont [4/16] 0.0, 128
    %293 = vxpose.xlu0.b32.cont [5/16] 0.0, 128
    %294 = vxpose.xlu0.b32.cont [6/16] 0.0, 128
    %295 = vxpose.xlu0.b32.cont [7/16] 0.0, 128
    %296 = vxpose.xlu0.b32.cont [8/16] 0.0, 128
    %297 = vxpose.xlu0.b32.cont [9/16] 0.0, 128
    %298 = vxpose.xlu0.b32.cont [10/16] 0.0, 128
    %299 = vxpose.xlu0.b32.cont [11/16] 0.0, 128
    %300 = vxpose.xlu0.b32.cont [12/16] 0.0, 128
    %301 = vxpose.xlu0.b32.cont [13/16] 0.0, 128
    %302 = vxpose.xlu0.b32.cont [14/16] 0.0, 128
    %303 = vxpose.xlu0.b32.cont [15/16] 0.0, 128
    %304 = vxpose.xlu0.b32.end [16/16] 0.0, 128
    %v305 = vpop.trf.xlu0
    %v306 = vpop.trf.xlu0
    %v307 = vpop.trf.xlu0
    %v308 = vpop.trf.xlu0
    %v309 = vpop.trf.xlu0
    %v310 = vpop.trf.xlu0
    %v311 = vpop.trf.xlu0
    %v312 = vpop.trf.xlu0
    %v313 = vpop.trf.xlu0
    %v314 = vpop.trf.xlu0
    %v315 = vpop.trf.xlu0
    %v316 = vpop.trf.xlu0
    %v317 = vpop.trf.xlu0
    %v318 = vpop.trf.xlu0
    %v319 = vpop.trf.xlu0
    %v320 = vpop.trf.xlu0
    %v321 = vld [vmem:[#allocation2] sm:$0x1]
    %323 = vset.pattern.permute.xlu0 0
    %324 = vperm.xlu0 %323, %v321
    %v325 = vpop.permute.xlu0 %324
    %v327 = vlaneseq
    %v328 = vshrl.u32 %v327, 7
    %v329 = vsub.s32 0, %v328
    %v330 = vrot.slane %v325, %v329
    %v331 = vadd.f32 %v305, %v330
    %v332 = vxor.u32 %v331, 2147483648
    %v333 = vmul.f32 %v332, 1.442695
    %v334 = vpow.pop %v333
    %v335 = vadd.f32 %v334, 1.0
    %v336 = vrcp.pop %v335
    %v337 = vmul.f32 1.0, %v336
    %vm338 = vcmask 57344
    %339 = vst.msk [vmem:[#allocation3] sm:$0x1] %vm338, %v337
    // Predicated region
    $region30: #{tpu_custom_call.1} parent=1 // pred_check
      _
    $region31: #{tpu_custom_call.1} parent=1 // pred_check_branch
      %341 = sbr.rel (0) target = $region33
    $region32: #{tpu_custom_call.1} parent=1 // pred_region
      %s343 = ssub.s32 16, 16
      %344 = vsyncadd [#allocation4], %s343
      %s346 = sshll.u32 [#allocation3], 4
      %s347 = int_to_ptr.vmem [resolvable:$true] %s346
      %349 = dma.vmem_to_hbm [thread:$0]  %s347, 16, %s7, [#allocation4]
    $region33: #{tpu_custom_call.1} parent=1 // pred_fallthru
      _
    // Predicated region
    $region34: #{tpu_custom_call.1} parent=1 // pred_check
      _
    $region35: #{tpu_custom_call.1} parent=1 // pred_check_branch
      %351 = sbr.rel (0) target = $region37
    $region36: #{tpu_custom_call.1} parent=1 // pred_region
      %352 = dma.done [#allocation4], 16
    $region37: #{tpu_custom_call.1} parent=1 // pred_fallthru
      _
    %353 = vsyncpa [#allocation4], 1

</llo_original>
